<compile_context>
chip_gen: v6e
topology: v6e:2x2x1
jax: 0.10.0
libtpu: 0.0.40
codegen_flags: <defaults>
</compile_context>

<pallas_src>
import jax
import jax.numpy as jnp
from jax.experimental import pallas as pl
from jax.experimental.pallas import tpu as pltpu


# --------------------------------------------------------------------------
# Single-step kernel (mirrors LSTMCell.forward for one call).
# --------------------------------------------------------------------------
def lstm_cell_kernel(x_ref, w_ref, b_ref, c_ref, h_out_ref, c_out_ref):
    out_ch = c_ref.shape[-1]
    # One fused MXU matmul + one bias add + one sigmoid over (B, 4*out).
    z = jnp.dot(x_ref[...], w_ref[...], preferred_element_type=jnp.float32)
    z = jax.nn.sigmoid(z + b_ref[...])
    f = z[:, 0 * out_ch:1 * out_ch]
    i = z[:, 1 * out_ch:2 * out_ch]
    o = z[:, 2 * out_ch:3 * out_ch]
    s = z[:, 3 * out_ch:4 * out_ch]
    c_new = f * c_ref[...] + i * s
    h_new = o * jnp.tanh(c_new)
    h_out_ref[...] = h_new.astype(h_out_ref.dtype)
    c_out_ref[...] = c_new.astype(c_out_ref.dtype)


def lstm_cell_forward(x, states, w_cat, b_cat):
    """x: (B, in); states = (hidden, cell) each (B, out).

    w_cat: (in, 4*out) float32, gate order [forget, input, output, state]
    b_cat: (1, 4*out)  float32
    Returns (hidden_new, cell_new).  Note: hidden is unused by the reference
    forward, so it is not passed into the kernel; the cell buffer is aliased
    in place (input_output_aliases) to avoid an extra HBM allocation.
    """
    _hidden, cell = states
    B = x.shape[0]
    out_ch = w_cat.shape[-1] // 4
    return pl.pallas_call(
        lstm_cell_kernel,
        out_shape=(
            jax.ShapeDtypeStruct((B, out_ch), jnp.float32),
            jax.ShapeDtypeStruct((B, out_ch), jnp.float32),
        ),
        in_specs=[
            pl.BlockSpec(memory_space=pltpu.MemorySpace.VMEM),  # x
            pl.BlockSpec(memory_space=pltpu.MemorySpace.VMEM),  # w_cat
            pl.BlockSpec(memory_space=pltpu.MemorySpace.VMEM),  # b_cat
            pl.BlockSpec(memory_space=pltpu.MemorySpace.VMEM),  # cell
        ],
        out_specs=(
            pl.BlockSpec(memory_space=pltpu.MemorySpace.VMEM),
            pl.BlockSpec(memory_space=pltpu.MemorySpace.VMEM),
        ),
        input_output_aliases={3: 1},   # cell input -> new-cell output, in place
    )(x, w_cat, b_cat, cell)


# --------------------------------------------------------------------------
# Sequence kernel: the whole (chunk of the) sequence fused into one grid step.
#   - one (Tc*B, in) @ (in, 4*out) gate matmul per chunk (hoisted recurrence)
#   - tiny statically-unrolled serial scan for c_t = f_t*c_{t-1} + i_t*s_t
#   - one vectorized o*tanh(c) epilogue per chunk
#   - single merged (2, Tc, B, out) output writeback per chunk
# The cell state carries across chunks in VMEM scratch (T axis "arbitrary").
# --------------------------------------------------------------------------
def lstm_seq_kernel(x_ref, w_ref, b_ref, c0_ref, hc_ref, c_carry):
    @pl.when(pl.program_id(0) == 0)
    def _():
        c_carry[...] = c0_ref[...]

    tc, bsz, in_ch = x_ref.shape
    out_ch = c_carry.shape[-1]

    # 1) Hoisted fused gate matmul over the whole chunk: M = tc*bsz rows
    #    (>=128 at the test shape) in a single MXU push, one sigmoid sweep.
    x2d = x_ref[...].reshape(tc * bsz, in_ch)
    z = jnp.dot(x2d, w_ref[...], preferred_element_type=jnp.float32)
    z = jax.nn.sigmoid(z + b_ref[...])

    f = z[:, 0 * out_ch:1 * out_ch].reshape(tc, bsz, out_ch)
    i = z[:, 1 * out_ch:2 * out_ch]
    o = z[:, 2 * out_ch:3 * out_ch].reshape(tc, bsz, out_ch)
    s = z[:, 3 * out_ch:4 * out_ch]
    p = (i * s).reshape(tc, bsz, out_ch)      # input_gate * state_gate, all t

    # 2) Tiny serial scan (VPU only): c_t = f_t * c_{t-1} + p_t.
    #    Statically unrolled; tc is small by construction.
    c = c_carry[...]
    cs = []
    for t in range(tc):
        c = f[t] * c + p[t]
        cs.append(c)
    c_carry[...] = c
    c_seq = jnp.stack(cs, axis=0)             # (tc, bsz, out)

    # 3) Vectorized epilogue: one tanh + mul sweep over the whole chunk.
    h_seq = o * jnp.tanh(c_seq)

    # 4) Single merged output block (halves writeback DMAs).
    #    NOTE: at out_ch=32 these are masked 32-lane stores; for production
    #    keep out_ch a multiple of 128 so stores are lane-dense.
    hc_ref[0] = h_seq.astype(hc_ref.dtype)
    hc_ref[1] = c_seq.astype(hc_ref.dtype)


def lstm_cell_sequence(x_seq, states, w_cat, b_cat, t_chunk=None):
    """Apply the cell over x_seq: (T, B, in).  Returns (h_seq, c_seq), each
    (T, B, out); final states are (h_seq[-1], c_seq[-1])."""
    _h0, c0 = states            # hidden is never read by the reference forward
    T, B, in_ch = x_seq.shape
    out_ch = w_cat.shape[-1] // 4

    if t_chunk is None:
        t_chunk = T             # whole sequence in one grid step (fits VMEM easily)
    assert T % t_chunk == 0
    n_chunks = T // t_chunk

    grid_spec = pltpu.PrefetchScalarGridSpec(
        num_scalar_prefetch=0,
        grid=(n_chunks,),
        in_specs=[
            # x streams per chunk (one DMA per chunk instead of per timestep).
            pl.BlockSpec((t_chunk, B, in_ch), lambda nc: (nc, 0, 0)),
            # Constant blocks: single-buffered (no wasted second pipeline buf).
            pl.BlockSpec((in_ch, 4 * out_ch), lambda nc: (0, 0),
                         pipeline_mode=pl.Buffered(1)),
            pl.BlockSpec((1, 4 * out_ch), lambda nc: (0, 0),
                         pipeline_mode=pl.Buffered(1)),
            pl.BlockSpec((B, out_ch), lambda nc: (0, 0),
                         pipeline_mode=pl.Buffered(1)),
        ],
        out_specs=pl.BlockSpec((2, t_chunk, B, out_ch),
                               lambda nc: (0, nc, 0, 0)),
        scratch_shapes=[pltpu.VMEM((B, out_ch), jnp.float32)],   # cell carry
    )
    hc = pl.pallas_call(
        lstm_seq_kernel,
        grid_spec=grid_spec,
        out_shape=jax.ShapeDtypeStruct((2, T, B, out_ch), jnp.float32),
        compiler_params=pltpu.CompilerParams(
            dimension_semantics=("arbitrary",),        # sequential cell carry
            vmem_limit_bytes=32 * 1024 * 1024,         # explicit (v7x: 64 MiB phys)
        ),
    )(x_seq, w_cat, b_cat, c0)
    return hc[0], hc[1]


# --------------------------------------------------------------------------
# Pure-JAX reference mirroring the PyTorch module (Linear: x @ W.T + b).
# --------------------------------------------------------------------------
def lstm_cell_reference(x, states, w_torch_layout, b):
    _hidden, cell = states

    def lin(k):
        return x @ w_torch_layout[k].T + b[k]

    f = jax.nn.sigmoid(lin(0))
    i = jax.nn.sigmoid(lin(1))
    o = jax.nn.sigmoid(lin(2))
    s = jax.nn.sigmoid(lin(3))
    cell_new = f * cell + i * s
    hidden_new = o * jnp.tanh(cell_new)
    return hidden_new, cell_new


if __name__ == "__main__":
    B, IN_CH, OUT_CH, T = 8, 32, 32, 16

    key = jax.random.PRNGKey(0)
    k_x, k_xs, k_h, k_c, k_w, k_b = jax.random.split(key, 6)

    x = jax.random.normal(k_x, (B, IN_CH), dtype=jnp.float32)
    x_seq = jax.random.normal(k_xs, (T, B, IN_CH), dtype=jnp.float32)
    hidden0 = jax.random.normal(k_h, (B, OUT_CH), dtype=jnp.float32)
    cell0 = jax.random.normal(k_c, (B, OUT_CH), dtype=jnp.float32)

    # Deterministic synthetic parameters in PyTorch-Linear layout (out, in),
    # gate order: [forget, input, output, state].
    bound = 1.0 / (IN_CH ** 0.5)
    w_torch = jax.random.uniform(
        k_w, (4, OUT_CH, IN_CH), minval=-bound, maxval=bound, dtype=jnp.float32)
    b_torch = jax.random.uniform(
        k_b, (4, OUT_CH), minval=-bound, maxval=bound, dtype=jnp.float32)

    # Fused lane-dense kernel layout: (in, 4*out) weights, (1, 4*out) bias.
    # Column k*OUT + o of w_cat == w_torch[k, o, :] (i.e. gate k's W.T).
    w_cat = jnp.transpose(w_torch, (2, 0, 1)).reshape(IN_CH, 4 * OUT_CH)
    b_cat = b_torch.reshape(1, 4 * OUT_CH)

    # References first (pure JAX).
    h_ref, c_ref = lstm_cell_reference(x, (hidden0, cell0), w_torch, b_torch)
    h_refs, c_refs = [], []
    h_r, c_r = hidden0, cell0
    for t in range(T):
        h_r, c_r = lstm_cell_reference(x_seq[t], (h_r, c_r), w_torch, b_torch)
        h_refs.append(h_r)
        c_refs.append(c_r)

    # --- single step kernel -------------------------------------------------
    h_new, c_new = lstm_cell_forward(x, (hidden0, cell0), w_cat, b_cat)
    jax.block_until_ready((h_new, c_new))
    assert h_new.shape == (B, OUT_CH) and c_new.shape == (B, OUT_CH)
    assert jnp.allclose(h_new, h_ref, atol=1e-5, rtol=1e-5)
    assert jnp.allclose(c_new, c_ref, atol=1e-5, rtol=1e-5)

    # --- fused T-step sequence kernel (whole sequence in one grid step) ------
    h_seq, c_seq = lstm_cell_sequence(x_seq, (hidden0, cell0), w_cat, b_cat)
    jax.block_until_ready((h_seq, c_seq))
    assert h_seq.shape == (T, B, OUT_CH) and c_seq.shape == (T, B, OUT_CH)
    for t in range(T):
        assert jnp.allclose(h_seq[t], h_refs[t], atol=1e-4, rtol=1e-4)
        assert jnp.allclose(c_seq[t], c_refs[t], atol=1e-4, rtol=1e-4)

    print("KERNEL_OK")
</pallas_src>

<mosaic_0001>
module attributes {stable_mosaic.version = 11 : i64} {
  func.func @lstm_cell_kernel(%arg0: memref<8x32xf32, #tpu.memory_space<vmem>>, %arg1: memref<32x128xf32, #tpu.memory_space<vmem>>, %arg2: memref<1x128xf32, #tpu.memory_space<vmem>>, %arg3: memref<8x32xf32, #tpu.memory_space<vmem>>, %arg4: memref<8x32xf32, #tpu.memory_space<vmem>>, %arg5: memref<8x32xf32, #tpu.memory_space<vmem>>) attributes {dimension_semantics = [], scalar_prefetch = 0 : i64, scratch_operands = 0 : i64, tpu.core_type = #tpu.core_type<tc>} {
    %c0 = arith.constant 0 : index
    %c0_0 = arith.constant 0 : index
    %0 = vector.load %arg0[%c0, %c0_0] : memref<8x32xf32, #tpu.memory_space<vmem>>, vector<8x32xf32>
    %c0_1 = arith.constant 0 : index
    %c0_2 = arith.constant 0 : index
    %1 = vector.load %arg1[%c0_1, %c0_2] : memref<32x128xf32, #tpu.memory_space<vmem>>, vector<32x128xf32>
    %cst = arith.constant dense<0.000000e+00> : vector<8x128xf32>
    %2 = tpu.matmul %0, %1, %cst {dimension_numbers = #tpu.dot_dimension_numbers<[1], [0], [0], [1], [0, 0, 1, 1], [], []>} : vector<8x32xf32>, vector<32x128xf32>, vector<8x128xf32> -> vector<8x128xf32>
    %c0_3 = arith.constant 0 : index
    %c0_4 = arith.constant 0 : index
    %3 = vector.load %arg2[%c0_3, %c0_4] : memref<1x128xf32, #tpu.memory_space<vmem>>, vector<1x128xf32>
    %4 = vector.broadcast %3 : vector<1x128xf32> to vector<8x128xf32>
    %5 = arith.addf %2, %4 : vector<8x128xf32>
    %6 = arith.negf %5 : vector<8x128xf32>
    %7 = math.exp %6 : vector<8x128xf32>
    %cst_5 = arith.constant 1.000000e+00 : f32
    %8 = vector.broadcast %cst_5 : f32 to vector<8x128xf32>
    %9 = arith.addf %8, %7 : vector<8x128xf32>
    %10 = arith.divf %8, %9 : vector<8x128xf32>
    %11 = vector.extract_strided_slice %10 {offsets = [0, 0], sizes = [8, 32], strides = [1, 1]} : vector<8x128xf32> to vector<8x32xf32>
    %12 = vector.extract_strided_slice %10 {offsets = [0, 32], sizes = [8, 32], strides = [1, 1]} : vector<8x128xf32> to vector<8x32xf32>
    %13 = vector.extract_strided_slice %10 {offsets = [0, 64], sizes = [8, 32], strides = [1, 1]} : vector<8x128xf32> to vector<8x32xf32>
    %14 = vector.extract_strided_slice %10 {offsets = [0, 96], sizes = [8, 32], strides = [1, 1]} : vector<8x128xf32> to vector<8x32xf32>
    %c0_6 = arith.constant 0 : index
    %c0_7 = arith.constant 0 : index
    %15 = vector.load %arg3[%c0_6, %c0_7] : memref<8x32xf32, #tpu.memory_space<vmem>>, vector<8x32xf32>
    %16 = arith.mulf %11, %15 : vector<8x32xf32>
    %17 = arith.mulf %12, %14 : vector<8x32xf32>
    %18 = arith.addf %16, %17 : vector<8x32xf32>
    %19 = math.tanh %18 : vector<8x32xf32>
    %20 = arith.mulf %13, %19 : vector<8x32xf32>
    %c0_8 = arith.constant 0 : index
    %c0_9 = arith.constant 0 : index
    %21 = vector.load %arg4[%c0_8, %c0_9] : memref<8x32xf32, #tpu.memory_space<vmem>>, vector<8x32xf32>
    tpu.vector_store %arg4[%c0_8, %c0_9], %20 {strides = array<i32>} : memref<8x32xf32, #tpu.memory_space<vmem>>, vector<8x32xf32>,
    %c0_10 = arith.constant 0 : index
    %c0_11 = arith.constant 0 : index
    %22 = vector.load %arg5[%c0_10, %c0_11] : memref<8x32xf32, #tpu.memory_space<vmem>>, vector<8x32xf32>
    tpu.vector_store %arg5[%c0_10, %c0_11], %18 {strides = array<i32>} : memref<8x32xf32, #tpu.memory_space<vmem>>, vector<8x32xf32>,
    return
  }
}

</mosaic_0001>

<llo_original>
// kernel: tpu_custom_call.1
$region0: #{tpu_custom_call.1}
  #allocation0 [shape = 'u32[]', space=smem, size = 0x4, offset = 0x4, fixed_abs, tag = 'smem constant byte address 0x4 - core index']
  #allocation1 [shape = 'u32[144,128]{1,0:T(1,128)}', space=vmem, size = 0x12000, scoped, tag = 'internal scratch']
  %s0 = inlined_call_operand.vmem [shape: f32[8,32], index: 0, kind: input, shape index: {}]
  %s1 = inlined_call_operand.hbm [shape: f32[32,128], index: 1, kind: input, shape index: {}]
  %s2 = inlined_call_operand.vmem [shape: f32[1,128], index: 2, kind: input, shape index: {}]
  %s3 = inlined_call_operand.hbm [shape: f32[8,32], index: 3, kind: input, shape index: {}, may-alias: {3,5}]
  %s4 = inlined_call_operand.hbm [shape: f32[8,32], index: 4, kind: output, shape index: {0}]
  %s5 = inlined_call_operand.hbm [shape: f32[8,32], index: 5, kind: output, shape index: {1}, may-alias: {3,5}]
  %6 = xla_tuple %s4, %s5
  %s7 = sld [smem:[#allocation0]]
  $region42: #{tpu_custom_call.1} parent=0
    _
  %s9 = ssub.s32 1, %s7
  %s10 = scalar_select 0, %s9, %s7
  $region1: #{tpu_custom_call.1} parent=0
    #allocation2 [shape = 'u8[16384]{0}', space=vmem, size = 0x4000, scoped, tag = 'input window, operand 1, single buffered']
    #allocation3 [shape = 's32[1]{0}', space=sflag, size = 0x4, scoped, tag = 'scoped memory for tpu_custom_call.1']
    #allocation4 [shape = 's32[1]{0}', space=sflag, size = 0x4, scoped, tag = 'scoped memory for tpu_custom_call.1']
    #allocation5 [shape = 'u8[4096]{0}', space=vmem, size = 0x1000, scoped, tag = 'input window, operand 3, single buffered']
    #allocation6 [shape = 's32[1]{0}', space=sflag, size = 0x4, scoped, tag = 'scoped memory for tpu_custom_call.1']
    #allocation7 [shape = 'u8[4096]{0}', space=vmem, size = 0x1000, scoped, tag = 'output window, operand 0, single buffered']
    #allocation8 [shape = 'u8[4096]{0}', space=vmem, size = 0x1000, scoped, tag = 'output window, operand 1, single buffered']
    #allocation9 [shape = 's32[1]{0}', space=sflag, size = 0x4, scoped, tag = 'scoped memory for tpu_custom_call.1']
    %11 = vsyncpa [#allocation3], 0
    %12 = vsyncpa [#allocation6], 0
    %13 = vsyncpa [#allocation4], 0
    %14 = vsyncpa [#allocation9], 0
    // Predicated region
    $region2: #{tpu_custom_call.1} parent=1 // pred_check
      _
    $region3: #{tpu_custom_call.1} parent=1 // pred_check_branch
      %16 = sbr.rel (0) target = $region5
    $region4: #{tpu_custom_call.1} parent=1 // pred_region
      _
    $region5: #{tpu_custom_call.1} parent=1 // pred_fallthru
      _
    // Predicated region
    $region6: #{tpu_custom_call.1} parent=1 // pred_check
      _
    $region7: #{tpu_custom_call.1} parent=1 // pred_check_branch
      %18 = sbr.rel (0) target = $region9
    $region8: #{tpu_custom_call.1} parent=1 // pred_region
      %s20 = ssub.s32 512, 512
      %21 = vsyncadd [#allocation3], %s20
      %s22 = sshll.u32 [#allocation2], 4
      %s23 = int_to_ptr.vmem [resolvable:$true] %s22
      %28 = dma.hbm_to_vmem [thread:$0]  %s1, 512, %s23, [#allocation3], 128, 128, 8
    $region9: #{tpu_custom_call.1} parent=1 // pred_fallthru
      _
    // Predicated region
    $region10: #{tpu_custom_call.1} parent=1 // pred_check
      _
    $region11: #{tpu_custom_call.1} parent=1 // pred_check_branch
      %30 = sbr.rel (0) target = $region13
    $region12: #{tpu_custom_call.1} parent=1 // pred_region
      _
    $region13: #{tpu_custom_call.1} parent=1 // pred_fallthru
      _
    // Predicated region
    $region14: #{tpu_custom_call.1} parent=1 // pred_check
      _
    $region15: #{tpu_custom_call.1} parent=1 // pred_check_branch
      %32 = sbr.rel (0) target = $region17
    $region16: #{tpu_custom_call.1} parent=1 // pred_region
      %s34 = ssub.s32 128, 128
      %35 = vsyncadd [#allocation6], %s34
      %s37 = sshll.u32 [#allocation5], 4
      %s38 = int_to_ptr.vmem [resolvable:$true] %s37
      %40 = dma.hbm_to_vmem [thread:$0]  %s3, 128, %s38, [#allocation6]
    $region17: #{tpu_custom_call.1} parent=1 // pred_fallthru
      _
    // Predicated region
    $region18: #{tpu_custom_call.1} parent=1 // pred_check
      _
    $region19: #{tpu_custom_call.1} parent=1 // pred_check_branch
      %42 = sbr.rel (0) target = $region21
    $region20: #{tpu_custom_call.1} parent=1 // pred_region
      %43 = dma.done [#allocation3], 512
    $region21: #{tpu_custom_call.1} parent=1 // pred_fallthru
      _
    // Predicated region
    $region22: #{tpu_custom_call.1} parent=1 // pred_check
      _
    $region23: #{tpu_custom_call.1} parent=1 // pred_check_branch
      %45 = sbr.rel (0) target = $region25
    $region24: #{tpu_custom_call.1} parent=1 // pred_region
      %46 = dma.done [#allocation6], 128
    $region25: #{tpu_custom_call.1} parent=1 // pred_fallthru
      _
    %v47 = vld [vmem:[%s0] sm:$0xff]
    %v48 = vld [vmem:[#allocation2] sm:$0xff]
    %v49 = vld [vmem:[#allocation2 + $0x8] sm:$0xff]
    %v50 = vld [vmem:[#allocation2 + $0x10] sm:$0xff]
    %v51 = vld [vmem:[#allocation2 + $0x18] sm:$0xff]
    %v52 = vld [vmem:[%s2] sm:$0x1]
    %v54 = vlaneseq
    %v55 = vshrl.u32 %v54, 7
    %v56 = vsub.s32 0, %v55
    %v57 = vrot.slane %v52, %v56
    %vm59 = vcmask 261120
    %v61 = vsel %vm59, %v47, 0
    %63 = vmatprep.subr.mxu0 0.0
    %64 = vmatpush1.msra.mxu0 0.0
    %65 = vmatprep.subr.mxu0 0.0
    %66 = vmatpush1.msra.mxu0 0.0
    %67 = vmatprep.subr.mxu0 0.0
    %68 = vmatpush1.msra.mxu0 0.0
    %69 = vmatprep.subr.mxu0 0.0
    %70 = vmatpush1.msra.mxu0 0.0
    %71 = vmatprep.subr.mxu0 0.0
    %72 = vmatpush1.msra.mxu0 0.0
    %73 = vmatprep.subr.mxu0 0.0
    %74 = vmatpush1.msra.mxu0 0.0
    %75 = vmatprep.subr.mxu0 0.0
    %76 = vmatpush1.msra.mxu0 0.0
    %77 = vmatprep.subr.mxu0 0.0
    %78 = vmatpush1.msra.mxu0 0.0
    %79 = vmatprep.subr.mxu0 0.0
    %80 = vmatpush1.msra.mxu0 0.0
    %81 = vmatprep.subr.mxu0 0.0
    %82 = vmatpush1.msra.mxu0 0.0
    %83 = vmatprep.subr.mxu0 0.0
    %84 = vmatpush1.msra.mxu0 0.0
    %85 = vmatprep.subr.mxu0 0.0
    %86 = vmatpush1.msra.mxu0 0.0
    %87 = vmatprep.subr.mxu0 0.0
    %88 = vmatpush1.msra.mxu0 %v51
    %89 = vmatprep.subr.mxu0 0.0
    %90 = vmatpush1.msra.mxu0 %v50
    %91 = vmatprep.subr.mxu0 0.0
    %92 = vmatpush1.msra.mxu0 %v49
    %93 = vmatprep.subr.mxu0 0.0
    %94 = vmatpush1.msra.mxu0 %v48
    %95 = vmatprep.subr.mxu0 0.0
    %96 = vmatpush2.msra.mxu0 0.0
    %97 = vmatprep.subr.mxu0 0.0
    %98 = vmatpush2.msra.mxu0 0.0
    %99 = vmatprep.subr.mxu0 0.0
    %100 = vmatpush2.msra.mxu0 0.0
    %101 = vmatprep.subr.mxu0 0.0
    %102 = vmatpush2.msra.mxu0 0.0
    %103 = vmatprep.subr.mxu0 0.0
    %104 = vmatpush2.msra.mxu0 0.0
    %105 = vmatprep.subr.mxu0 0.0
    %106 = vmatpush2.msra.mxu0 0.0
    %107 = vmatprep.subr.mxu0 0.0
    %108 = vmatpush2.msra.mxu0 0.0
    %109 = vmatprep.subr.mxu0 0.0
    %110 = vmatpush2.msra.mxu0 0.0
    %111 = vmatprep.subr.mxu0 0.0
    %112 = vmatpush2.msra.mxu0 0.0
    %113 = vmatprep.subr.mxu0 0.0
    %114 = vmatpush2.msra.mxu0 0.0
    %115 = vmatprep.subr.mxu0 0.0
    %116 = vmatpush2.msra.mxu0 0.0
    %117 = vmatprep.subr.mxu0 0.0
    %118 = vmatpush2.msra.mxu0 0.0
    %119 = vmatprep.subr.mxu0 0.0
    %120 = vmatpush2.msra.mxu0 0.0
    %121 = vmatprep.subr.mxu0 0.0
    %122 = vmatpush2.msra.mxu0 0.0
    %123 = vmatprep.subr.mxu0 0.0
    %124 = vmatpush2.msra.mxu0 0.0
    %125 = vmatprep.subr.mxu0 0.0
    %126 = vmatpush2.msra.mxu0 0.0
    %127 = vmatprep.mubr.f32.mxu0 0.0
    %128 = vmatmul.mubr.f32.gmra.mxu0 %v61
    %v129 = vpop.f32.mrf.mxu0
    %v130 = vadd.f32 %v57, %v129
    %v131 = vpop.f32.mrf.mxu0
    %132 = vdwg.mxu0
    %v133 = vxor.u32 %v130, 2147483648
    %v134 = vmul.f32 %v133, 1.442695
    %v135 = vpow.pop %v134
    %v136 = vadd.f32 %v135, 1.0
    %v137 = vrcp.pop %v136
    %v138 = vmul.f32 1.0, %v137
    %v139 = vld [vmem:[#allocation5] sm:$0xff]
    %v140 = vmul.f32 %v138, %v139
    %142 = vrot.lane.b32.xlu0 %v138, 64
    %v143 = vpop.permute.xlu0 %142
    %v145 = vmul.f32 %v138, %v143
    %147 = vrot.lane.b32.xlu0 %v145, 96
    %v148 = vpop.permute.xlu0 %147
    %v150 = vadd.f32 %v140, %v148
    %v151 = vtanh.pop %v150
    %153 = vrot.lane.b32.xlu0 %v151, 64
    %v154 = vpop.permute.xlu0 %153
    %v156 = vmul.f32 %v138, %v154
    %158 = vrot.lane.b32.xlu0 %v156, 64
    %v159 = vpop.permute.xlu0 %158
    %161 = vst.msk [vmem:[#allocation7] sm:$0xff] %vm59, %v159
    %162 = vst.msk [vmem:[#allocation8] sm:$0xff] %vm59, %v150
    // Predicated region
    $region26: #{tpu_custom_call.1} parent=1 // pred_check
      _
    $region27: #{tpu_custom_call.1} parent=1 // pred_check_branch
      %164 = sbr.rel (0) target = $region29
    $region28: #{tpu_custom_call.1} parent=1 // pred_region
      %s166 = ssub.s32 128, 128
      %167 = vsyncadd [#allocation4], %s166
      %s169 = sshll.u32 [#allocation7], 4
      %s170 = int_to_ptr.vmem [resolvable:$true] %s169
      %172 = dma.vmem_to_hbm [thread:$0]  %s170, 128, %s4, [#allocation4]
    $region29: #{tpu_custom_call.1} parent=1 // pred_fallthru
      _
    // Predicated region
    $region30: #{tpu_custom_call.1} parent=1 // pred_check
      _
    $region31: #{tpu_custom_call.1} parent=1 // pred_check_branch
      %174 = sbr.rel (0) target = $region33
    $region32: #{tpu_custom_call.1} parent=1 // pred_region
      %s176 = ssub.s32 128, 128
      %177 = vsyncadd [#allocation9], %s176
      %s179 = sshll.u32 [#allocation8], 4
      %s180 = int_to_ptr.vmem [resolvable:$true] %s179
      %182 = dma.vmem_to_hbm [thread:$0]  %s180, 128, %s5, [#allocation9]
    $region33: #{tpu_custom_call.1} parent=1 // pred_fallthru
      _
    // Predicated region
    $region34: #{tpu_custom_call.1} parent=1 // pred_check
      _
    $region35: #{tpu_custom_call.1} parent=1 // pred_check_branch
      %184 = sbr.rel (0) target = $region37
    $region36: #{tpu_custom_call.1} parent=1 // pred_region
      %185 = dma.done [#allocation4], 128
    $region37: #{tpu_custom_call.1} parent=1 // pred_fallthru
      _
    // Predicated region
    $region38: #{tpu_custom_call.1} parent=1 // pred_check
      _
    $region39: #{tpu_custom_call.1} parent=1 // pred_check_branch
      %187 = sbr.rel (0) target = $region41
    $region40: #{tpu_custom_call.1} parent=1 // pred_region
      %188 = dma.done [#allocation9], 128
    $region41: #{tpu_custom_call.1} parent=1 // pred_fallthru
      _
    %189 = vsyncpa [#allocation3], 1
    %190 = vsyncpa [#allocation6], 1
    %191 = vsyncpa [#allocation4], 1
    %192 = vsyncpa [#allocation9], 1

</llo_original>
